<compile_context>
chip_gen: v6e
topology: v6e:2x2x1
jax: 0.10.0
libtpu: 0.0.40
codegen_flags: <defaults>
</compile_context>

<pallas_src>
import functools

import jax
import jax.numpy as jnp
from jax import lax
from jax.experimental import pallas as pl
from jax.experimental.pallas import tpu as pltpu


def _round_up(x, m):
    return ((x + m - 1) // m) * m


# ----------------------- kernel 1: fused QKV projection -----------------------

def _proj_kernel(x_ref, w_ref, b_ref, q_ref, k_ref, v_ref, *, cqp):
    """x (chunk, C) bf16; w (C, 2*CQP+CP) bf16; b (1, 2*CQP+CP) f32."""
    qkv = jnp.dot(x_ref[...], w_ref[...],
                  preferred_element_type=jnp.float32) + b_ref[...]
    # 128-aligned static lane slices of the fused projection result.
    q_ref[...] = qkv[:, :cqp].astype(q_ref.dtype)
    k_ref[...] = qkv[:, cqp:2 * cqp].astype(k_ref.dtype)
    v_ref[...] = qkv[:, 2 * cqp:].astype(v_ref.dtype)


# -------------------- kernel 2: tiled attention + residual --------------------

def _attn_kernel(q_ref, k_ref, v_ref, xr_ref, o_ref):
    """q (TQ,CQP) bf16, k (HW,CQP) bf16, v (HW,CP) bf16, xr (TQ,CP) f32."""
    # Scores: contract the last axes of q and k (NT form, no explicit k.T /
    # XLU transpose; same formulation as the flash-attention einsum pattern).
    s = lax.dot_general(q_ref[...], k_ref[...], (((1,), (1,)), ((), ())),
                        preferred_element_type=jnp.float32)          # (TQ, HW)
    m = jnp.max(s, axis=-1, keepdims=True)                           # f32 stats
    e = jnp.exp(s - m)
    l = jnp.sum(e, axis=-1, keepdims=True)
    # Un-normalized probabilities through the MXU; normalize the small (TQ, CP)
    # result afterwards instead of the (TQ, HW) probability matrix.
    pv = jnp.dot(e.astype(jnp.bfloat16), v_ref[...],
                 preferred_element_type=jnp.float32)                 # (TQ, CP)
    o_ref[...] = (pv * pl.reciprocal(l, approx=True)
                  + xr_ref[...]).astype(o_ref.dtype)


# ------------------------- tiling / VMEM bookkeeping -------------------------

def _vmem_budgets():
    """(tile-selection budget, vmem_limit cap) chosen per TPU generation."""
    cap = None
    try:
        cap = int(pltpu.get_tpu_info().vmem_capacity_bytes)
    except Exception:
        cap = None
    if cap is None or cap <= 0:
        cap = 64 * 2**20                       # unknown: assume the small part
    if cap <= 64 * 2**20:                      # v7x: 64 MiB per TensorCore
        return 28 * 2**20, 52 * 2**20
    return 80 * 2**20, 100 * 2**20             # v5e / v6e: 128 MiB


def _proj_vmem_bytes(chunk, c, cqp, cp, ctot):
    x_in = 2 * chunk * c * 2                        # bf16 input rows (dbl-buf)
    w_b = 2 * (c * ctot * 2 + ctot * 4)             # fused bf16 W + f32 bias
    outs = 2 * chunk * (2 * cqp + cp) * 2           # bf16 q/k/v output tiles
    live = chunk * ctot * 4                         # f32 fused-matmul transient
    return x_in + w_b + outs + live


def _attn_vmem_bytes(tq, hw, cqp, cp):
    q_in = 2 * tq * cqp * 2                         # bf16 query tile
    kv_in = 2 * hw * (cqp + cp) * 2                 # full-sequence bf16 K and V
    xr_in = 2 * tq * cp * 4                         # f32 residual tile
    o_out = 2 * tq * cp * 4                         # f32 output tile
    live = 2 * tq * hw * 4 + tq * hw * 2 + tq * cp * 4   # s, e, e_bf16, pv
    return q_in + kv_in + xr_in + o_out + live


def _pick_rows(hw, fits_fn):
    """Largest row tile (multiple of 8, dividing HW, <=512) within budget.
    Falls back to the SMALLEST legal tile — never to the full HW."""
    cands = [t for t in (8, 16, 32, 64, 128, 256, 512)
             if t <= hw and hw % t == 0]
    if not cands:
        return hw                                  # tiny / irregular HW
    ok = [t for t in cands if fits_fn(t)]
    return max(ok) if ok else min(cands)


# ----------------------------------- wrapper ----------------------------------

def self_attention_pallas(x_nchw, wq, bq, wk, bk, wv, bv):
    """x_nchw: (B, C, H, W) float32. Weights are (Cin, Cout); biases (1, Cout)."""
    b, c, h, w = x_nchw.shape
    hw = h * w
    cq = wq.shape[1]
    cqp = _round_up(cq, 128)                 # lane-padded q/k width
    cp = _round_up(c, 128)                   # lane-padded value/output width
    ctot = 2 * cqp + cp

    tile_budget, limit_cap = _vmem_budgets()

    # NCHW -> (B, HW, C), spatial row-major (matches torch .view(b, -1, h*w)).
    x_seq = jnp.transpose(x_nchw, (0, 2, 3, 1)).reshape(b, hw, c)
    x_bf16 = x_seq.astype(jnp.bfloat16)                       # MXU projection input
    x_res = jnp.pad(x_seq, ((0, 0), (0, 0), (0, cp - c)))     # lane-padded residual

    # Fused, lane-padded [Wq | Wk | Wv] in bf16 (zero cols/bias are inert).
    def pad_cols(a, n):
        return jnp.pad(a, ((0, 0), (0, n - a.shape[1])))

    w_qkv = jnp.concatenate(
        [pad_cols(wq, cqp), pad_cols(wk, cqp), pad_cols(wv, cp)],
        axis=1).astype(jnp.bfloat16)                          # (C, ctot)
    b_qkv = jnp.concatenate(
        [pad_cols(bq, cqp), pad_cols(bk, cqp), pad_cols(bv, cp)],
        axis=1).astype(jnp.float32)                           # (1, ctot)

    # ---- kernel 1: fused QKV projection, chunked over HW ----
    chunk = _pick_rows(
        hw, lambda t: _proj_vmem_bytes(t, c, cqp, cp, ctot) <= tile_budget)
    n_ck = hw // chunk
    proj_vmem = int(min(limit_cap,
                        max(32 * 2**20,
                            1.5 * _proj_vmem_bytes(chunk, c, cqp, cp, ctot))))

    q_pad, k_pad, v_pad = pl.pallas_call(
        functools.partial(_proj_kernel, cqp=cqp),
        out_shape=(jax.ShapeDtypeStruct((b, hw, cqp), jnp.bfloat16),
                   jax.ShapeDtypeStruct((b, hw, cqp), jnp.bfloat16),
                   jax.ShapeDtypeStruct((b, hw, cp), jnp.bfloat16)),
        grid_spec=pltpu.PrefetchScalarGridSpec(
            num_scalar_prefetch=0,
            grid=(b, n_ck),
            in_specs=[
                pl.BlockSpec((pl.Squeezed(), chunk, c), lambda i, j: (i, j, 0)),
                pl.BlockSpec((c, ctot), lambda i, j: (0, 0)),     # [Wq|Wk|Wv]
                pl.BlockSpec((1, ctot), lambda i, j: (0, 0)),     # [bq|bk|bv]
            ],
            out_specs=[
                pl.BlockSpec((pl.Squeezed(), chunk, cqp), lambda i, j: (i, j, 0)),
                pl.BlockSpec((pl.Squeezed(), chunk, cqp), lambda i, j: (i, j, 0)),
                pl.BlockSpec((pl.Squeezed(), chunk, cp), lambda i, j: (i, j, 0)),
            ],
        ),
        compiler_params=pltpu.CompilerParams(
            dimension_semantics=("parallel", "parallel"),
            vmem_limit_bytes=proj_vmem,
        ),
    )(x_bf16, w_qkv, b_qkv)

    # ---- kernel 2: query-tiled attention + residual ----
    tq = _pick_rows(hw, lambda t: _attn_vmem_bytes(t, hw, cqp, cp) <= tile_budget)
    n_q = hw // tq
    attn_vmem = int(min(limit_cap,
                        max(32 * 2**20, 1.5 * _attn_vmem_bytes(tq, hw, cqp, cp))))

    out_pad = pl.pallas_call(
        _attn_kernel,
        out_shape=jax.ShapeDtypeStruct((b, hw, cp), jnp.float32),
        grid_spec=pltpu.PrefetchScalarGridSpec(
            num_scalar_prefetch=0,
            grid=(b, n_q),
            in_specs=[
                pl.BlockSpec((pl.Squeezed(), tq, cqp), lambda i, j: (i, j, 0)),  # Q tile
                pl.BlockSpec((pl.Squeezed(), hw, cqp), lambda i, j: (i, 0, 0)),  # K (full)
                pl.BlockSpec((pl.Squeezed(), hw, cp), lambda i, j: (i, 0, 0)),   # V (full)
                pl.BlockSpec((pl.Squeezed(), tq, cp), lambda i, j: (i, j, 0)),   # residual
            ],
            out_specs=pl.BlockSpec((pl.Squeezed(), tq, cp), lambda i, j: (i, j, 0)),
        ),
        compiler_params=pltpu.CompilerParams(
            dimension_semantics=("parallel", "parallel"),
            vmem_limit_bytes=attn_vmem,
        ),
    )(q_pad, k_pad, v_pad, x_res)

    # Strip lane padding; (B, HW, C) -> NCHW.
    out = out_pad[:, :, :c].reshape(b, h, w, c)
    return jnp.transpose(out, (0, 3, 1, 2))


# --------------------------------- reference ----------------------------------

def _reference(x_nchw, wq, bq, wk, bk, wv, bv):
    """Pure-JAX reference mirroring the PyTorch forward exactly (f32)."""
    b, c, h, w = x_nchw.shape
    hw = h * w
    x_flat = x_nchw.reshape(b, c, hw)                                   # (B, C, HW)
    q = jnp.einsum('co,bcp->bop', wq, x_flat) + bq.reshape(1, -1, 1)    # (B, Cq, HW)
    k = jnp.einsum('co,bcp->bop', wk, x_flat) + bk.reshape(1, -1, 1)    # (B, Cq, HW)
    v = jnp.einsum('co,bcp->bop', wv, x_flat) + bv.reshape(1, -1, 1)    # (B, C, HW)
    qT = jnp.transpose(q, (0, 2, 1))                                    # (B, HW, Cq)
    attn = jax.nn.softmax(jnp.einsum('bic,bcj->bij', qT, k), axis=-1)   # (B, HW, HW)
    out = jnp.einsum('bcj,bij->bci', v, attn)                           # bmm(v, attn^T)
    return out.reshape(b, c, h, w) + x_nchw


if __name__ == "__main__":
    key = jax.random.PRNGKey(0)
    B, C, H, W = 2, 32, 8, 8          # channels divisible by 8
    Cq = C // 8

    k_x, k_wq, k_bq, k_wk, k_bk, k_wv, k_bv = jax.random.split(key, 7)
    x = jax.random.normal(k_x, (B, C, H, W), dtype=jnp.float32)

    scale = 1.0 / jnp.sqrt(jnp.float32(C))
    wq = jax.random.normal(k_wq, (C, Cq), dtype=jnp.float32) * scale
    bq = jax.random.normal(k_bq, (1, Cq), dtype=jnp.float32) * 0.1
    wk = jax.random.normal(k_wk, (C, Cq), dtype=jnp.float32) * scale
    bk = jax.random.normal(k_bk, (1, Cq), dtype=jnp.float32) * 0.1
    wv = jax.random.normal(k_wv, (C, C), dtype=jnp.float32) * scale
    bv = jax.random.normal(k_bv, (1, C), dtype=jnp.float32) * 0.1

    y = self_attention_pallas(x, wq, bq, wk, bk, wv, bv)
    y = jax.block_until_ready(y)

    y_ref = _reference(x, wq, bq, wk, bk, wv, bv)
    assert y.shape == (B, C, H, W)
    # End-to-end bf16 MXU path (projections, scores, PV) + approx reciprocal;
    # softmax statistics and accumulation stay f32 -> relaxed tolerance.
    err = float(jnp.max(jnp.abs(y - y_ref)))
    assert err < 1e-1, f"max abs err {err} vs f32 reference"

    print("KERNEL_OK")
</pallas_src>

<mosaic_0001>
module attributes {stable_mosaic.version = 11 : i64} {
  func.func @_proj_kernel(%arg0: i32, %arg1: i32, %arg2: memref<1x64x32xbf16, #tpu.memory_space<vmem>>, %arg3: memref<32x384xbf16, #tpu.memory_space<vmem>>, %arg4: memref<1x384xf32, #tpu.memory_space<vmem>>, %arg5: memref<1x64x128xbf16, #tpu.memory_space<vmem>>, %arg6: memref<1x64x128xbf16, #tpu.memory_space<vmem>>, %arg7: memref<1x64x128xbf16, #tpu.memory_space<vmem>>) attributes {dimension_semantics = [#tpu.dimension_semantics<parallel>, #tpu.dimension_semantics<parallel>], iteration_bounds = array<i64: 2, 1>, scalar_prefetch = 0 : i64, scratch_operands = 0 : i64, tpu.core_type = #tpu.core_type<tc>, window_params = [{transform_indices = @transform_0, window_bounds = array<i64: 1, 64, 32>}, {pipeline_mode = #tpu.pipeline_mode<synchronous>, transform_indices = @transform_1, window_bounds = array<i64: 32, 384>}, {pipeline_mode = #tpu.pipeline_mode<synchronous>, transform_indices = @transform_2, window_bounds = array<i64: 1, 384>}, {transform_indices = @transform_3, window_bounds = array<i64: 1, 64, 128>}, {transform_indices = @transform_4, window_bounds = array<i64: 1, 64, 128>}, {transform_indices = @transform_5, window_bounds = array<i64: 1, 64, 128>}]} {
    %c0 = arith.constant 0 : index
    %c0_0 = arith.constant 0 : index
    %c0_1 = arith.constant 0 : index
    %0 = vector.load %arg2[%c0, %c0_0, %c0_1] : memref<1x64x32xbf16, #tpu.memory_space<vmem>>, vector<1x64x32xbf16>
    %1 = vector.shape_cast %0 : vector<1x64x32xbf16> to vector<64x32xbf16>
    %c0_2 = arith.constant 0 : index
    %c0_3 = arith.constant 0 : index
    %2 = vector.load %arg3[%c0_2, %c0_3] : memref<32x384xbf16, #tpu.memory_space<vmem>>, vector<32x384xbf16>
    %cst = arith.constant dense<0.000000e+00> : vector<64x384xf32>
    %3 = tpu.matmul %1, %2, %cst {dimension_numbers = #tpu.dot_dimension_numbers<[1], [0], [0], [1], [0, 0, 1, 1], [], []>} : vector<64x32xbf16>, vector<32x384xbf16>, vector<64x384xf32> -> vector<64x384xf32>
    %c0_4 = arith.constant 0 : index
    %c0_5 = arith.constant 0 : index
    %4 = vector.load %arg4[%c0_4, %c0_5] : memref<1x384xf32, #tpu.memory_space<vmem>>, vector<1x384xf32>
    %5 = vector.broadcast %4 : vector<1x384xf32> to vector<64x384xf32>
    %6 = arith.addf %3, %5 : vector<64x384xf32>
    %7 = vector.extract_strided_slice %6 {offsets = [0, 0], sizes = [64, 128], strides = [1, 1]} : vector<64x384xf32> to vector<64x128xf32>
    %8 = arith.truncf %7 : vector<64x128xf32> to vector<64x128xbf16>
    %c0_6 = arith.constant 0 : index
    %c0_7 = arith.constant 0 : index
    %c0_8 = arith.constant 0 : index
    %9 = vector.load %arg5[%c0_6, %c0_7, %c0_8] : memref<1x64x128xbf16, #tpu.memory_space<vmem>>, vector<1x64x128xbf16>
    %10 = vector.shape_cast %9 : vector<1x64x128xbf16> to vector<64x128xbf16>
    %11 = vector.shape_cast %8 : vector<64x128xbf16> to vector<1x64x128xbf16>
    tpu.vector_store %arg5[%c0_6, %c0_7, %c0_8], %11 {strides = array<i32>} : memref<1x64x128xbf16, #tpu.memory_space<vmem>>, vector<1x64x128xbf16>,
    %12 = vector.extract_strided_slice %6 {offsets = [0, 128], sizes = [64, 128], strides = [1, 1]} : vector<64x384xf32> to vector<64x128xf32>
    %13 = arith.truncf %12 : vector<64x128xf32> to vector<64x128xbf16>
    %c0_9 = arith.constant 0 : index
    %c0_10 = arith.constant 0 : index
    %c0_11 = arith.constant 0 : index
    %14 = vector.load %arg6[%c0_9, %c0_10, %c0_11] : memref<1x64x128xbf16, #tpu.memory_space<vmem>>, vector<1x64x128xbf16>
    %15 = vector.shape_cast %14 : vector<1x64x128xbf16> to vector<64x128xbf16>
    %16 = vector.shape_cast %13 : vector<64x128xbf16> to vector<1x64x128xbf16>
    tpu.vector_store %arg6[%c0_9, %c0_10, %c0_11], %16 {strides = array<i32>} : memref<1x64x128xbf16, #tpu.memory_space<vmem>>, vector<1x64x128xbf16>,
    %17 = vector.extract_strided_slice %6 {offsets = [0, 256], sizes = [64, 128], strides = [1, 1]} : vector<64x384xf32> to vector<64x128xf32>
    %18 = arith.truncf %17 : vector<64x128xf32> to vector<64x128xbf16>
    %c0_12 = arith.constant 0 : index
    %c0_13 = arith.constant 0 : index
    %c0_14 = arith.constant 0 : index
    %19 = vector.load %arg7[%c0_12, %c0_13, %c0_14] : memref<1x64x128xbf16, #tpu.memory_space<vmem>>, vector<1x64x128xbf16>
    %20 = vector.shape_cast %19 : vector<1x64x128xbf16> to vector<64x128xbf16>
    %21 = vector.shape_cast %18 : vector<64x128xbf16> to vector<1x64x128xbf16>
    tpu.vector_store %arg7[%c0_12, %c0_13, %c0_14], %21 {strides = array<i32>} : memref<1x64x128xbf16, #tpu.memory_space<vmem>>, vector<1x64x128xbf16>,
    return
  }
  func.func @transform_0(%arg0: i32, %arg1: i32) -> (i32, i32, i32) {
    %c0_i32 = arith.constant 0 : i32
    %c0_i32_0 = arith.constant 0 : i32
    return %arg0, %arg1, %c0_i32 : i32, i32, i32
  }
  func.func @transform_1(%arg0: i32, %arg1: i32) -> (i32, i32) {
    %c0_i32 = arith.constant 0 : i32
    %c0_i32_0 = arith.constant 0 : i32
    %c0_i32_1 = arith.constant 0 : i32
    return %c0_i32, %c0_i32_0 : i32, i32
  }
  func.func @transform_2(%arg0: i32, %arg1: i32) -> (i32, i32) {
    %c0_i32 = arith.constant 0 : i32
    %c0_i32_0 = arith.constant 0 : i32
    %c0_i32_1 = arith.constant 0 : i32
    return %c0_i32, %c0_i32_0 : i32, i32
  }
  func.func @transform_3(%arg0: i32, %arg1: i32) -> (i32, i32, i32) {
    %c0_i32 = arith.constant 0 : i32
    %c0_i32_0 = arith.constant 0 : i32
    return %arg0, %arg1, %c0_i32 : i32, i32, i32
  }
  func.func @transform_4(%arg0: i32, %arg1: i32) -> (i32, i32, i32) {
    %c0_i32 = arith.constant 0 : i32
    %c0_i32_0 = arith.constant 0 : i32
    return %arg0, %arg1, %c0_i32 : i32, i32, i32
  }
  func.func @transform_5(%arg0: i32, %arg1: i32) -> (i32, i32, i32) {
    %c0_i32 = arith.constant 0 : i32
    %c0_i32_0 = arith.constant 0 : i32
    return %arg0, %arg1, %c0_i32 : i32, i32, i32
  }
}

</mosaic_0001>

<llo_original>
// kernel: tpu_custom_call.1
$region0: #{tpu_custom_call.1}
  #allocation0 [shape = 'u32[]', space=smem, size = 0x4, offset = 0x4, fixed_abs, tag = 'smem constant byte address 0x4 - core index']
  #allocation1 [shape = 'u32[144,128]{1,0:T(1,128)}', space=vmem, size = 0x12000, scoped, tag = 'internal scratch']
  %s0 = inlined_call_operand.vmem [shape: bf16[2,64,32], index: 0, kind: input, shape index: {}]
  %s1 = inlined_call_operand.vmem [shape: bf16[32,384], index: 1, kind: input, shape index: {}]
  %s2 = inlined_call_operand.vmem [shape: f32[1,384], index: 2, kind: input, shape index: {}]
  %s3 = inlined_call_operand.hbm [shape: bf16[2,64,128], index: 3, kind: output, shape index: {0}]
  %s4 = inlined_call_operand.hbm [shape: bf16[2,64,128], index: 4, kind: output, shape index: {1}]
  %s5 = inlined_call_operand.hbm [shape: bf16[2,64,128], index: 5, kind: output, shape index: {2}]
  %6 = xla_tuple %s3, %s4, %s5
  %s7 = sld [smem:[#allocation0]]
  $region61: #{tpu_custom_call.1} parent=0
    _
  %s9 = ssub.s32 1, %s7
  %s10 = scalar_select 0, %s9, %s7
  $region1: #{tpu_custom_call.1} parent=0
    #allocation2 [shape = 'u8[32768]{0}', space=vmem, size = 0x8000, scoped, tag = 'output window, operand 0']
    #allocation3 [shape = 's32[2]{0}', space=sflag, size = 0x8, scoped, tag = 'scoped memory for tpu_custom_call.1']
    #allocation4 [shape = 'u8[32768]{0}', space=vmem, size = 0x8000, scoped, tag = 'output window, operand 1']
    #allocation5 [shape = 's32[2]{0}', space=sflag, size = 0x8, scoped, tag = 'scoped memory for tpu_custom_call.1']
    #allocation6 [shape = 'u8[32768]{0}', space=vmem, size = 0x8000, scoped, tag = 'output window, operand 2']
    %11 = vsyncpa [#allocation3], 0
    %s12 = scalar_lea.sflag [#allocation3], 1
    %13 = vsyncpa %s12, 0
    %14 = vsyncpa [#allocation5], 0
    %s15 = scalar_lea.sflag [#allocation5], 1
    %16 = vsyncpa %s15, 0
    loop: start=0, step=1, limit=4
    $region2: #{tpu_custom_call.1} parent=1 // loop_pre_header
      _
    $region3: #{tpu_custom_call.1} parent=1 // loop_header
      %s18 = sphi 0, %s22
      %p19 = scmp.ge.s32.totalorder %s18, 4
      %s25 = sphi 0, %s37
      %s26 = sphi 0, %s33
      %s27 = sphi 0, %s25
      %s28 = sphi 0, %s26
      %s29 = sphi 0, %s27
      %s30 = sphi 0, %s28
      %s42 = sphi 0, %s44
      %s45 = sphi 0, %s42
      %s46 = sphi 0, %s45
      %s62 = sphi 0, %s46
      %s66 = sphi 0, %s66
      %s68 = sphi 0, %s66
      %s69 = sphi 0, %s68
      %s83 = sphi 0, %s69
      %s87 = sphi 0, %s87
      %s89 = sphi 0, %s87
      %s90 = sphi 0, %s89
      %s104 = sphi 0, %s90
      %s112 = sphi 0, %s114
      %s115 = sphi 0, %s112
      %s116 = sphi 0, %s115
      %s132 = sphi 0, %s116
      %s140 = sphi 0, %s142
      %s143 = sphi 0, %s140
      %s144 = sphi 0, %s143
      %s160 = sphi 0, %s144
      %s168 = sphi 0, %s170
      %s171 = sphi 0, %s168
      %s172 = sphi 0, %s171
      %s188 = sphi 0, %s172
    $region4: #{tpu_custom_call.1} parent=1 // loop_header_branch
      %21 = sbr.rel (%p19) target = $region8
    $region5: #{tpu_custom_call.1} parent=1 // loop_body
      %s23 = ssub.s32 %s18, 1
      %s24 = ssub.s32 %s18, 2
      %s31 = sadd.s32 1, %s26
      %p32 = scmp.ge.s32.totalorder %s31, 1
      %s33 = scalar_select %p32, 0, %s31
      %s34 = sadd.s32 1, %s25
      %s35 = scalar_select %p32, %s34, %s25
      %p36 = scmp.ge.s32.totalorder %s35, 2
      %s37 = scalar_select %p36, 0, %s35
      %s38 = ssub.s32 %s25, %s37
      %s39 = ssub.s32 %s26, %s33
      %s40 = sor.u32 %s38, %s39
      %p41 = scmp.eq.s32.totalorder %s40, 0
      %s43 = sadd.s32 %s42, 1
      %s44 = scalar_select %p41, %s42, %s43
      %p47 = pneg %p41
      %p48 = scmp.eq.s32.totalorder %s18, 1
      %p49 = por %p47, %p48
      %p50 = scmp.ne.s32.totalorder %s42, %s45
      %p51 = scmp.eq.s32.totalorder %s18, 0
      %p52 = por %p50, %p51
      %p53 = scmp.ne.s32.totalorder %s42, %s45
      %p54 = scmp.eq.s32.totalorder %s23, 1
      %p55 = por %p53, %p54
      %p56 = scmp.ne.s32.totalorder %s45, %s46
      %p57 = scmp.eq.s32.totalorder %s23, 0
      %p58 = por %p56, %p57
      %p59 = scmp.ne.s32.totalorder %s45, %s46
      %p60 = scmp.eq.s32.totalorder %s24, 1
      %p61 = por %p59, %p60
      %p63 = scmp.ne.s32.totalorder %s46, %s62
      %p64 = scmp.eq.s32.totalorder %s24, 0
      %p65 = por %p63, %p64
      %s67 = sadd.s32 %s66, 1
      %p70 = scmp.eq.s32.totalorder %s18, 1
      %p71 = scmp.ne.s32.totalorder %s66, %s68
      %p72 = scmp.eq.s32.totalorder %s18, 0
      %p73 = por %p71, %p72
      %p74 = scmp.ne.s32.totalorder %s66, %s68
      %p75 = scmp.eq.s32.totalorder %s23, 1
      %p76 = por %p74, %p75
      %p77 = scmp.ne.s32.totalorder %s68, %s69
      %p78 = scmp.eq.s32.totalorder %s23, 0
      %p79 = por %p77, %p78
      %p80 = scmp.ne.s32.totalorder %s68, %s69
      %p81 = scmp.eq.s32.totalorder %s24, 1
      %p82 = por %p80, %p81
      %p84 = scmp.ne.s32.totalorder %s69, %s83
      %p85 = scmp.eq.s32.totalorder %s24, 0
      %p86 = por %p84, %p85
      %s88 = sadd.s32 %s87, 1
      %p91 = scmp.eq.s32.totalorder %s18, 1
      %p92 = scmp.ne.s32.totalorder %s87, %s89
      %p93 = scmp.eq.s32.totalorder %s18, 0
      %p94 = por %p92, %p93
      %p95 = scmp.ne.s32.totalorder %s87, %s89
      %p96 = scmp.eq.s32.totalorder %s23, 1
      %p97 = por %p95, %p96
      %p98 = scmp.ne.s32.totalorder %s89, %s90
      %p99 = scmp.eq.s32.totalorder %s23, 0
      %p100 = por %p98, %p99
      %p101 = scmp.ne.s32.totalorder %s89, %s90
      %p102 = scmp.eq.s32.totalorder %s24, 1
      %p103 = por %p101, %p102
      %p105 = scmp.ne.s32.totalorder %s90, %s104
      %p106 = scmp.eq.s32.totalorder %s24, 0
      %p107 = por %p105, %p106
      %s108 = ssub.s32 %s25, %s37
      %s109 = ssub.s32 %s26, %s33
      %s110 = sor.u32 %s108, %s109
      %p111 = scmp.eq.s32.totalorder %s110, 0
      %s113 = sadd.s32 %s112, 1
      %s114 = scalar_select %p111, %s112, %s113
      %p117 = pneg %p111
      %p118 = scmp.eq.s32.totalorder %s18, 1
      %p119 = por %p117, %p118
      %p120 = scmp.ne.s32.totalorder %s112, %s115
      %p121 = scmp.eq.s32.totalorder %s18, 0
      %p122 = por %p120, %p121
      %p123 = scmp.ne.s32.totalorder %s112, %s115
      %p124 = scmp.eq.s32.totalorder %s23, 1
      %p125 = por %p123, %p124
      %p126 = scmp.ne.s32.totalorder %s115, %s116
      %p127 = scmp.eq.s32.totalorder %s23, 0
      %p128 = por %p126, %p127
      %p129 = scmp.ne.s32.totalorder %s115, %s116
      %p130 = scmp.eq.s32.totalorder %s24, 1
      %p131 = por %p129, %p130
      %p133 = scmp.ne.s32.totalorder %s116, %s132
      %p134 = scmp.eq.s32.totalorder %s24, 0
      %p135 = por %p133, %p134
      %s136 = ssub.s32 %s25, %s37
      %s137 = ssub.s32 %s26, %s33
      %s138 = sor.u32 %s136, %s137
      %p139 = scmp.eq.s32.totalorder %s138, 0
      %s141 = sadd.s32 %s140, 1
      %s142 = scalar_select %p139, %s140, %s141
      %p145 = pneg %p139
      %p146 = scmp.eq.s32.totalorder %s18, 1
      %p147 = por %p145, %p146
      %p148 = scmp.ne.s32.totalorder %s140, %s143
      %p149 = scmp.eq.s32.totalorder %s18, 0
      %p150 = por %p148, %p149
      %p151 = scmp.ne.s32.totalorder %s140, %s143
      %p152 = scmp.eq.s32.totalorder %s23, 1
      %p153 = por %p151, %p152
      %p154 = scmp.ne.s32.totalorder %s143, %s144
      %p155 = scmp.eq.s32.totalorder %s23, 0
      %p156 = por %p154, %p155
      %p157 = scmp.ne.s32.totalorder %s143, %s144
      %p158 = scmp.eq.s32.totalorder %s24, 1
      %p159 = por %p157, %p158
      %p161 = scmp.ne.s32.totalorder %s144, %s160
      %p162 = scmp.eq.s32.totalorder %s24, 0
      %p163 = por %p161, %p162
      %s164 = ssub.s32 %s25, %s37
      %s165 = ssub.s32 %s26, %s33
      %s166 = sor.u32 %s164, %s165
      %p167 = scmp.eq.s32.totalorder %s166, 0
      %s169 = sadd.s32 %s168, 1
      %s170 = scalar_select %p167, %s168, %s169
      %p173 = pneg %p167
      %p174 = scmp.eq.s32.totalorder %s18, 1
      %p175 = por %p173, %p174
      %p176 = scmp.ne.s32.totalorder %s168, %s171
      %p177 = scmp.eq.s32.totalorder %s18, 0
      %p178 = por %p176, %p177
      %p179 = scmp.ne.s32.totalorder %s168, %s171
      %p180 = scmp.eq.s32.totalorder %s23, 1
      %p181 = por %p179, %p180
      %p182 = scmp.ne.s32.totalorder %s171, %s172
      %p183 = scmp.eq.s32.totalorder %s23, 0
      %p184 = por %p182, %p183
      %p185 = scmp.ne.s32.totalorder %s171, %s172
      %p186 = scmp.eq.s32.totalorder %s24, 1
      %p187 = por %p185, %p186
      %p189 = scmp.ne.s32.totalorder %s172, %s188
      %p190 = scmp.eq.s32.totalorder %s24, 0
      %p191 = por %p189, %p190
      %p192 = scmp.le.s32.totalorder 1, %s18
      %p193 = scmp.lt.s32.totalorder %s18, 3
      %p194 = pnand %p192, %p193
      %p195 = pneg %p194
      // Predicated region
      $region9: #{tpu_custom_call.1} parent=5 // pred_check
        _
      $region10: #{tpu_custom_call.1} parent=5 // pred_check_branch
        %197 = sbr.rel (%p194) target = $region12
      $region11: #{tpu_custom_call.1} parent=5 // pred_region
        %s198 = ssub.s32 %s18, 1
        // Predicated region
        $region13: #{tpu_custom_call.1} parent=11 // pred_check
          %p199 = pneg %p79
        $region14: #{tpu_custom_call.1} parent=11 // pred_check_branch
          %201 = sbr.rel (%p199) target = $region16
        $region15: #{tpu_custom_call.1} parent=11 // pred_region
          _
        $region16: #{tpu_custom_call.1} parent=11 // pred_fallthru
          _
        // Predicated region
        $region17: #{tpu_custom_call.1} parent=11 // pred_check
          %p202 = pneg %p100
        $region18: #{tpu_custom_call.1} parent=11 // pred_check_branch
          %204 = sbr.rel (%p202) target = $region20
        $region19: #{tpu_custom_call.1} parent=11 // pred_region
          _
        $region20: #{tpu_custom_call.1} parent=11 // pred_fallthru
          _
      $region12: #{tpu_custom_call.1} parent=5 // pred_fallthru
        _
      %p205 = scmp.lt.s32.totalorder %s18, 2
      // Predicated region
      $region21: #{tpu_custom_call.1} parent=5 // pred_check
        %p206 = pneg %p205
      $region22: #{tpu_custom_call.1} parent=5 // pred_check_branch
        %208 = sbr.rel (%p206) target = $region24
      $region23: #{tpu_custom_call.1} parent=5 // pred_region
        // Predicated region
        $region25: #{tpu_custom_call.1} parent=23 // pred_check
          %p209 = pneg %p52
        $region26: #{tpu_custom_call.1} parent=23 // pred_check_branch
          %211 = sbr.rel (%p209) target = $region28
        $region27: #{tpu_custom_call.1} parent=23 // pred_region
          %s212 = smul.u32 8, %s26
          %p213 = scmp.lt.s32.totalorder %s25, 1
          %s214 = scalar_select %p213, %s25, 1
          %p215 = scmp.lt.s32.totalorder %s212, 7
          %s216 = scalar_select %p215, %s212, 7
          %s217 = smul.addr %s214, 8
          %s218 = sadd.s32 %s216, %s217
          %s219 = smul.addr %s218, 4
          %s220 = scalar_lea.vmem %s0, %s219
          %s221 = smul.u32 8, %s26
        $region28: #{tpu_custom_call.1} parent=23 // pred_fallthru
          _
      $region24: #{tpu_custom_call.1} parent=5 // pred_fallthru
        _
      %p222 = scmp.le.s32.totalorder 1, %s18
      %p223 = scmp.lt.s32.totalorder %s18, 3
      %p224 = pnand %p222, %p223
      %p225 = pneg %p224
      // Predicated region
      $region29: #{tpu_custom_call.1} parent=5 // pred_check
        _
      $region30: #{tpu_custom_call.1} parent=5 // pred_check_branch
        %227 = sbr.rel (%p224) target = $region32
      $region31: #{tpu_custom_call.1} parent=5 // pred_region
        %s228 = ssub.s32 %s18, 1
        %s229 = smul.u32 8, %s28
        %p230 = scmp.lt.s32.totalorder %s27, 1
        %s231 = scalar_select %p230, %s27, 1
        %p232 = scmp.lt.s32.totalorder %s229, 7
        %s233 = scalar_select %p232, %s229, 7
        %s234 = smul.addr %s231, 8
        %s235 = sadd.s32 %s233, %s234
        %s236 = smul.addr %s235, 4
        %s237 = scalar_lea.vmem %s0, %s236
        %p238 = pneg %p58
        %p239 = pneg %p55
        %p240 = pneg %p79
        %p241 = pneg %p76
        %p242 = pneg %p100
        %p243 = pneg %p97
        %p244 = pneg %p128
        %p245 = pneg %p125
        %s246 = sand.u32 %s115, 1
        %s247 = scalar_lea.sflag [#allocation3], %s246
        %s248 = sand.u32 %s115, 1
        %s249 = smul.addr %s248, 32
        %s250 = scalar_lea.vmem [#allocation2], %s249
        %p251 = pneg %p156
        %p252 = pneg %p153
        %s253 = sand.u32 %s23, 1
        %s254 = scalar_lea.sflag [#allocation5], %s253
        %s255 = sand.u32 %s143, 1
        %s256 = smul.addr %s255, 32
        %s257 = scalar_lea.vmem [#allocation4], %s256
        %p258 = pneg %p184
        %p259 = pneg %p181
        %s260 = sand.u32 %s23, 1
        %s261 = scalar_lea.sflag [#allocation5], %s260
        %s262 = sand.u32 %s171, 1
        %s263 = smul.addr %s262, 32
        %s264 = scalar_lea.vmem [#allocation6], %s263
        %s265 = smul.u32 8, %s28
        %p266 = scmp.lt.s32.totalorder %s27, 1
        %s267 = scalar_select %p266, %s27, 1
        %p268 = scmp.lt.s32.totalorder %s265, 7
        %s269 = scalar_select %p268, %s265, 7
        %s270 = smul.addr %s267, 8
        %s271 = sadd.s32 %s269, %s270
        %s272 = smul.addr %s271, 4
        %s273 = scalar_lea.vmem %s0, %s272
        %s274 = smul.u32 8, %s28
        %s275 = smul.u32 8, %s28
        %s276 = smul.u32 8, %s28
        %s277 = smul.u32 8, %s28
        %v279 = vld [vmem:[%s273] sm:$0xf]
        %v280 = vld [vmem:[%s273 + $0x4] sm:$0xf]
        %v281 = vld [vmem:[%s273 + $0x8] sm:$0xf]
        %v282 = vld [vmem:[%s273 + $0xc] sm:$0xf]
        %v283 = vld [vmem:[%s273 + $0x10] sm:$0xf]
        %v284 = vld [vmem:[%s273 + $0x14] sm:$0xf]
        %v285 = vld [vmem:[%s273 + $0x18] sm:$0xf]
        %v286 = vld [vmem:[%s273 + $0x1c] sm:$0xf]
        %v287 = vld [vmem:[%s1] sm:$0xff]
        %v288 = vld [vmem:[%s1 + $0x8] sm:$0xf]
        %v289 = vld [vmem:[%s1 + $0xc] sm:$0xff]
        %v290 = vld [vmem:[%s1 + $0x14] sm:$0xf]
        %v291 = vld [vmem:[%s1 + $0x18] sm:$0xff]
        %v292 = vld [vmem:[%s1 + $0x20] sm:$0xf]
        %v293 = vld [vmem:[%s1 + $0x24] sm:$0xff]
        %v294 = vld [vmem:[%s1 + $0x2c] sm:$0xf]
        %v295 = vld [vmem:[%s2] sm:$0x7]
        %v297 = vlaneseq
        %v298 = vshrl.u32 %v297, 7
        %v299 = vsub.s32 0, %v298
        %v300 = vrot.slane %v295, %v299
        %v301 = vlaneseq
        %v302 = vshrl.u32 %v301, 7
        %v303 = vsub.s32 1, %v302
        %v304 = vrot.slane %v295, %v303
        %v305 = vlaneseq
        %v306 = vshrl.u32 %v305, 7
        %v307 = vsub.s32 2, %v306
        %v308 = vrot.slane %v295, %v307
        %v320 = vunpack.c.l.b16 %v279
        %v321 = vunpack.c.l.b16 %v280
        %v322 = vunpack.c.l.b16 %v281
        %v323 = vunpack.c.l.b16 %v282
        %v324 = vunpack.c.l.b16 %v283
        %v325 = vunpack.c.l.b16 %v284
        %v326 = vunpack.c.l.b16 %v285
        %v327 = vunpack.c.l.b16 %v286
        %v328 = vpack.c.b16 %v321, %v320
        %v329 = vpack.c.b16 %v323, %v322
        %v330 = vpack.c.b16 %v325, %v324
        %v331 = vpack.c.b16 %v327, %v326
        %v340 = vunpack.c.l.b16 %v287
        %v341 = vunpack.c.h.b16 %v287
        %v342 = vunpack.c.l.b16 %v288
        %v343 = vunpack.c.l.b16 %v289
        %v344 = vunpack.c.h.b16 %v289
        %v345 = vunpack.c.l.b16 %v290
        %v346 = vunpack.c.l.b16 %v291
        %v347 = vunpack.c.h.b16 %v291
        %v348 = vunpack.c.l.b16 %v292
        %v349 = vunpack.c.l.b16 %v293
        %v350 = vunpack.c.h.b16 %v293
        %v351 = vunpack.c.l.b16 %v294
        %v352 = vpack.c.b16 %v343, %v340
        %v353 = vpack.c.b16 %v344, %v341
        %v354 = vpack.c.b16 %v345, %v342
        %v355 = vpack.c.b16 %v349, %v346
        %v356 = vpack.c.b16 %v350, %v347
        %v357 = vpack.c.b16 %v351, %v348
        %vm364 = vcmask 261120
        %v366 = vsel %vm364, %v328, 0
        %v369 = vsel %vm364, %v329, 0
        %v372 = vsel %vm364, %v330, 0
        %v375 = vsel %vm364, %v331, 0
        %377 = vmatprep.subr.bf16.mxu0 0
        %378 = vmatpush1.bf16.msra.mxu0 0
        %379 = vmatprep.subr.bf16.mxu0 0
        %380 = vmatpush1.bf16.msra.mxu0 0
        %381 = vmatprep.subr.bf16.mxu0 0
        %382 = vmatpush1.bf16.msra.mxu0 0
        %383 = vmatprep.subr.bf16.mxu0 0
        %384 = vmatpush1.bf16.msra.mxu0 0
        %385 = vmatprep.subr.bf16.mxu0 0
        %386 = vmatpush1.bf16.msra.mxu0 0
        %387 = vmatprep.subr.bf16.mxu0 0
        %388 = vmatpush1.bf16.msra.mxu0 0
        %389 = vmatprep.subr.bf16.mxu0 %v356
        %390 = vmatpush1.bf16.msra.mxu0 %v355
        %391 = vmatprep.subr.bf16.mxu0 %v353
        %392 = vmatpush1.bf16.msra.mxu0 %v352
        %393 = vmatprep.subr.bf16.mxu0 0
        %394 = vmatpush2.bf16.msra.mxu0 0
        %395 = vmatprep.subr.bf16.mxu0 0
        %396 = vmatpush2.bf16.msra.mxu0 0
        %397 = vmatprep.subr.bf16.mxu0 0
        %398 = vmatpush2.bf16.msra.mxu0 0
        %399 = vmatprep.subr.bf16.mxu0 0
        %400 = vmatpush2.bf16.msra.mxu0 0
        %401 = vmatprep.subr.bf16.mxu0 0
        %402 = vmatpush2.bf16.msra.mxu0 0
        %403 = vmatprep.subr.bf16.mxu0 0
        %404 = vmatpush2.bf16.msra.mxu0 0
        %405 = vmatprep.subr.bf16.mxu0 0
        %406 = vmatpush2.bf16.msra.mxu0 0
        %407 = vmatprep.subr.bf16.mxu0 0
        %408 = vmatpush2.bf16.msra.mxu0 0
        %409 = vmatprep.mubr.bf16.mxu0 0
        %410 = vmatmul.mubr.bf16.gmra.mxu0 %v366
        %v411 = vpop.f32.mrf.mxu0
        %v412 = vadd.f32 %v300, %v411
        %v413 = vpop.f32.mrf.mxu0
        %v414 = vadd.f32 %v304, %v413
        %v415 = vpop.f32.mrf.mxu0
        %v416 = vadd.f32 %v300, %v415
        %v417 = vpop.f32.mrf.mxu0
        %v418 = vadd.f32 %v304, %v417
        %419 = vmatprep.mubr.bf16.mxu0 0
        %420 = vmatmul.mubr.bf16.gmra.mxu0 %v369
        %v421 = vpop.f32.mrf.mxu0
        %v422 = vadd.f32 %v300, %v421
        %v423 = vpop.f32.mrf.mxu0
        %v424 = vadd.f32 %v304, %v423
        %v425 = vpop.f32.mrf.mxu0
        %v426 = vadd.f32 %v300, %v425
        %v427 = vpop.f32.mrf.mxu0
        %v428 = vadd.f32 %v304, %v427
        %429 = vmatprep.mubr.bf16.mxu0 0
        %430 = vmatmul.mubr.bf16.gmra.mxu0 %v372
        %v431 = vpop.f32.mrf.mxu0
        %v432 = vadd.f32 %v300, %v431
        %v433 = vpop.f32.mrf.mxu0
        %v434 = vadd.f32 %v304, %v433
        %v435 = vpop.f32.mrf.mxu0
        %v436 = vadd.f32 %v300, %v435
        %v437 = vpop.f32.mrf.mxu0
        %v438 = vadd.f32 %v304, %v437
        %439 = vmatprep.mubr.bf16.mxu0 0
        %440 = vmatmul.mubr.bf16.gmra.mxu0 %v375
        %v441 = vpop.f32.mrf.mxu0
        %v442 = vadd.f32 %v300, %v441
        %v443 = vpop.f32.mrf.mxu0
        %v444 = vadd.f32 %v304, %v443
        %v445 = vpop.f32.mrf.mxu0
        %v446 = vadd.f32 %v300, %v445
        %v447 = vpop.f32.mrf.mxu0
        %v448 = vadd.f32 %v304, %v447
        %449 = vdwg.mxu0
        %450 = vmatprep.subr.bf16.mxu0 0
        %451 = vmatpush1.bf16.msra.mxu0 0
        %452 = vmatprep.subr.bf16.mxu0 0
        %453 = vmatpush1.bf16.msra.mxu0 0
        %454 = vmatprep.subr.bf16.mxu0 0
        %455 = vmatpush1.bf16.msra.mxu0 0
        %456 = vmatprep.subr.bf16.mxu0 0
        %457 = vmatpush1.bf16.msra.mxu0 0
        %458 = vmatprep.subr.bf16.mxu0 0
        %459 = vmatpush1.bf16.msra.mxu0 0
        %460 = vmatprep.subr.bf16.mxu0 0
        %461 = vmatpush1.bf16.msra.mxu0 0
        %462 = vmatprep.subr.bf16.mxu0 0
        %463 = vmatpush1.bf16.msra.mxu0 %v357
        %464 = vmatprep.subr.bf16.mxu0 0
        %465 = vmatpush1.bf16.msra.mxu0 %v354
        %466 = vmatprep.subr.bf16.mxu0 0
        %467 = vmatpush2.bf16.msra.mxu0 0
        %468 = vmatprep.subr.bf16.mxu0 0
        %469 = vmatpush2.bf16.msra.mxu0 0
        %470 = vmatprep.subr.bf16.mxu0 0
        %471 = vmatpush2.bf16.msra.mxu0 0
        %472 = vmatprep.subr.bf16.mxu0 0
        %473 = vmatpush2.bf16.msra.mxu0 0
        %474 = vmatprep.subr.bf16.mxu0 0
        %475 = vmatpush2.bf16.msra.mxu0 0
        %476 = vmatprep.subr.bf16.mxu0 0
        %477 = vmatpush2.bf16.msra.mxu0 0
        %478 = vmatprep.subr.bf16.mxu0 0
        %479 = vmatpush2.bf16.msra.mxu0 0
        %480 = vmatprep.subr.bf16.mxu0 0
        %481 = vmatpush2.bf16.msra.mxu0 0
        %482 = vmatprep.mubr.bf16.mxu0 0
        %483 = vmatmul.mubr.bf16.gmra.mxu0 %v366
        %v484 = vpop.f32.mrf.mxu0
        %v485 = vadd.f32 %v308, %v484
        %v486 = vpop.f32.mrf.mxu0
        %v487 = vpop.f32.mrf.mxu0
        %v488 = vadd.f32 %v308, %v487
        %v489 = vpop.f32.mrf.mxu0
        %490 = vmatprep.mubr.bf16.mxu0 0
        %491 = vmatmul.mubr.bf16.gmra.mxu0 %v369
        %v492 = vpop.f32.mrf.mxu0
        %v493 = vadd.f32 %v308, %v492
        %v494 = vpop.f32.mrf.mxu0
        %v495 = vpop.f32.mrf.mxu0
        %v496 = vadd.f32 %v308, %v495
        %v497 = vpop.f32.mrf.mxu0
        %498 = vmatprep.mubr.bf16.mxu0 0
        %499 = vmatmul.mubr.bf16.gmra.mxu0 %v372
        %v500 = vpop.f32.mrf.mxu0
        %v501 = vadd.f32 %v308, %v500
        %v502 = vpop.f32.mrf.mxu0
        %v503 = vpop.f32.mrf.mxu0
        %v504 = vadd.f32 %v308, %v503
        %v505 = vpop.f32.mrf.mxu0
        %506 = vmatprep.mubr.bf16.mxu0 0
        %507 = vmatmul.mubr.bf16.gmra.mxu0 %v375
        %v508 = vpop.f32.mrf.mxu0
        %v509 = vadd.f32 %v308, %v508
        %v510 = vpop.f32.mrf.mxu0
        %v511 = vpop.f32.mrf.mxu0
        %v512 = vadd.f32 %v308, %v511
        %v513 = vpop.f32.mrf.mxu0
        %514 = vdwg.mxu0
        %v515 = vpack.c.bf16 %v416, %v412
        %v516 = vpack.c.bf16 %v426, %v422
        %v517 = vpack.c.bf16 %v436, %v432
        %v518 = vpack.c.bf16 %v446, %v442
        %v523 = vunpack.c.l.b16 %v515
        %v524 = vunpack.c.h.b16 %v515
        %v525 = vunpack.c.l.b16 %v516
        %v526 = vunpack.c.h.b16 %v516
        %v527 = vunpack.c.l.b16 %v517
        %v528 = vunpack.c.h.b16 %v517
        %v529 = vunpack.c.l.b16 %v518
        %v530 = vunpack.c.h.b16 %v518
        %v531 = vpack.c.b16 %v523, %v523
        %v532 = vpack.c.b16 %v524, %v524
        %v533 = vpack.c.b16 %v525, %v525
        %v534 = vpack.c.b16 %v526, %v526
        %v535 = vpack.c.b16 %v527, %v527
        %v536 = vpack.c.b16 %v528, %v528
        %v537 = vpack.c.b16 %v529, %v529
        %v538 = vpack.c.b16 %v530, %v530
        %547 = vst [vmem:[%s250] sm:$0xf] %v531
        %548 = vst [vmem:[%s250 + $0x4] sm:$0xf] %v532
        %549 = vst [vmem:[%s250 + $0x8] sm:$0xf] %v533
        %550 = vst [vmem:[%s250 + $0xc] sm:$0xf] %v534
        %551 = vst [vmem:[%s250 + $0x10] sm:$0xf] %v535
        %552 = vst [vmem:[%s250 + $0x14] sm:$0xf] %v536
        %553 = vst [vmem:[%s250 + $0x18] sm:$0xf] %v537
        %554 = vst [vmem:[%s250 + $0x1c] sm:$0xf] %v538
        %v555 = vpack.c.bf16 %v418, %v414
        %v556 = vpack.c.bf16 %v428, %v424
        %v557 = vpack.c.bf16 %v438, %v434
        %v558 = vpack.c.bf16 %v448, %v444
        %v563 = vunpack.c.l.b16 %v555
        %v564 = vunpack.c.h.b16 %v555
        %v565 = vunpack.c.l.b16 %v556
        %v566 = vunpack.c.h.b16 %v556
        %v567 = vunpack.c.l.b16 %v557
        %v568 = vunpack.c.h.b16 %v557
        %v569 = vunpack.c.l.b16 %v558
        %v570 = vunpack.c.h.b16 %v558
        %v571 = vpack.c.b16 %v563, %v563
        %v572 = vpack.c.b16 %v564, %v564
        %v573 = vpack.c.b16 %v565, %v565
        %v574 = vpack.c.b16 %v566, %v566
        %v575 = vpack.c.b16 %v567, %v567
        %v576 = vpack.c.b16 %v568, %v568
        %v577 = vpack.c.b16 %v569, %v569
        %v578 = vpack.c.b16 %v570, %v570
        %587 = vst [vmem:[%s257] sm:$0xf] %v571
        %588 = vst [vmem:[%s257 + $0x4] sm:$0xf] %v572
        %589 = vst [vmem:[%s257 + $0x8] sm:$0xf] %v573
        %590 = vst [vmem:[%s257 + $0xc] sm:$0xf] %v574
        %591 = vst [vmem:[%s257 + $0x10] sm:$0xf] %v575
        %592 = vst [vmem:[%s257 + $0x14] sm:$0xf] %v576
        %593 = vst [vmem:[%s257 + $0x18] sm:$0xf] %v577
        %594 = vst [vmem:[%s257 + $0x1c] sm:$0xf] %v578
        %v595 = vpack.c.bf16 %v488, %v485
        %v596 = vpack.c.bf16 %v496, %v493
        %v597 = vpack.c.bf16 %v504, %v501
        %v598 = vpack.c.bf16 %v512, %v509
        %v603 = vunpack.c.l.b16 %v595
        %v604 = vunpack.c.h.b16 %v595
        %v605 = vunpack.c.l.b16 %v596
        %v606 = vunpack.c.h.b16 %v596
        %v607 = vunpack.c.l.b16 %v597
        %v608 = vunpack.c.h.b16 %v597
        %v609 = vunpack.c.l.b16 %v598
        %v610 = vunpack.c.h.b16 %v598
        %v611 = vpack.c.b16 %v603, %v603
        %v612 = vpack.c.b16 %v604, %v604
        %v613 = vpack.c.b16 %v605, %v605
        %v614 = vpack.c.b16 %v606, %v606
        %v615 = vpack.c.b16 %v607, %v607
        %v616 = vpack.c.b16 %v608, %v608
        %v617 = vpack.c.b16 %v609, %v609
        %v618 = vpack.c.b16 %v610, %v610
        %627 = vst [vmem:[%s264] sm:$0xf] %v611
        %628 = vst [vmem:[%s264 + $0x4] sm:$0xf] %v612
        %629 = vst [vmem:[%s264 + $0x8] sm:$0xf] %v613
        %630 = vst [vmem:[%s264 + $0xc] sm:$0xf] %v614
        %631 = vst [vmem:[%s264 + $0x10] sm:$0xf] %v615
        %632 = vst [vmem:[%s264 + $0x14] sm:$0xf] %v616
        %633 = vst [vmem:[%s264 + $0x18] sm:$0xf] %v617
        %634 = vst [vmem:[%s264 + $0x1c] sm:$0xf] %v618
        %s635 = sand.u32 %s115, 1
        %s636 = scalar_lea.sflag [#allocation3], %s635
        %s637 = sand.u32 %s115, 1
        %s638 = smul.addr %s637, 32
        %s639 = scalar_lea.vmem [#allocation2], %s638
        %s640 = sand.u32 %s23, 1
        %s641 = scalar_lea.sflag [#allocation5], %s640
        %s642 = sand.u32 %s143, 1
        %s643 = smul.addr %s642, 32
        %s644 = scalar_lea.vmem [#allocation4], %s643
        %s645 = sand.u32 %s23, 1
        %s646 = scalar_lea.sflag [#allocation5], %s645
        %s647 = sand.u32 %s171, 1
        %s648 = smul.addr %s647, 32
        %s649 = scalar_lea.vmem [#allocation6], %s648
        // Predicated region
        $region33: #{tpu_custom_call.1} parent=31 // pred_check
          %p650 = pneg %p125
        $region34: #{tpu_custom_call.1} parent=31 // pred_check_branch
          %652 = sbr.rel (%p650) target = $region36
        $region35: #{tpu_custom_call.1} parent=31 // pred_region
          %s653 = smul.u32 8, %s28
          %s655 = ssub.s32 512, 512
          %656 = vsyncadd %s636, %s655
          %s657 = smul.addr %s27, 8
          %s658 = sadd.s32 %s653, %s657
          %s659 = smul.addr %s658, 64
          %s660 = scalar_lea.hbm %s3, %s659
          %s661 = sshll.u32 %s639, 4
          %s662 = int_to_ptr.vmem [resolvable:$true] %s661
          %667 = dma.vmem_to_hbm [thread:$0]  %s662, 512, %s660, %s636, 64, 64, 4
        $region36: #{tpu_custom_call.1} parent=31 // pred_fallthru
          _
        // Predicated region
        $region37: #{tpu_custom_call.1} parent=31 // pred_check
          %p668 = pneg %p153
        $region38: #{tpu_custom_call.1} parent=31 // pred_check_branch
          %670 = sbr.rel (%p668) target = $region40
        $region39: #{tpu_custom_call.1} parent=31 // pred_region
          %s671 = smul.u32 8, %s28
          %s673 = ssub.s32 512, 512
          %674 = vsyncadd %s641, %s673
          %s675 = smul.addr %s27, 8
          %s676 = sadd.s32 %s671, %s675
          %s677 = smul.addr %s676, 64
          %s678 = scalar_lea.hbm %s4, %s677
          %s679 = sshll.u32 %s644, 4
          %s680 = int_to_ptr.vmem [resolvable:$true] %s679
          %685 = dma.vmem_to_hbm [thread:$0]  %s680, 512, %s678, %s641, 64, 64, 4
        $region40: #{tpu_custom_call.1} parent=31 // pred_fallthru
          _
        // Predicated region
        $region41: #{tpu_custom_call.1} parent=31 // pred_check
          %p686 = pneg %p181
        $region42: #{tpu_custom_call.1} parent=31 // pred_check_branch
          %688 = sbr.rel (%p686) target = $region44
        $region43: #{tpu_custom_call.1} parent=31 // pred_region
          %s689 = smul.u32 8, %s28
          %s691 = ssub.s32 512, 512
          %692 = vsyncadd %s646, %s691
          %s693 = smul.addr %s27, 8
          %s694 = sadd.s32 %s689, %s693
          %s695 = smul.addr %s694, 64
          %s696 = scalar_lea.hbm %s5, %s695
          %s697 = sshll.u32 %s649, 4
          %s698 = int_to_ptr.vmem [resolvable:$true] %s697
          %703 = dma.vmem_to_hbm [thread:$0]  %s698, 512, %s696, %s646, 64, 64, 4
        $region44: #{tpu_custom_call.1} parent=31 // pred_fallthru
          _
      $region32: #{tpu_custom_call.1} parent=5 // pred_fallthru
        _
      %p704 = scmp.le.s32.totalorder 2, %s18
      // Predicated region
      $region45: #{tpu_custom_call.1} parent=5 // pred_check
        %p705 = pneg %p704
      $region46: #{tpu_custom_call.1} parent=5 // pred_check_branch
        %707 = sbr.rel (%p705) target = $region48
      $region47: #{tpu_custom_call.1} parent=5 // pred_region
        %s708 = ssub.s32 %s18, 2
        // Predicated region
        $region49: #{tpu_custom_call.1} parent=47 // pred_check
          %p709 = pneg %p131
        $region50: #{tpu_custom_call.1} parent=47 // pred_check_branch
          %711 = sbr.rel (%p709) target = $region52
        $region51: #{tpu_custom_call.1} parent=47 // pred_region
          %s712 = sand.u32 %s116, 1
          %s713 = scalar_lea.sflag [#allocation3], %s712
          %s714 = sand.u32 %s116, 1
          %s715 = smul.addr %s714, 32
          %s716 = scalar_lea.vmem [#allocation2], %s715
          %717 = dma.done %s713, 512
        $region52: #{tpu_custom_call.1} parent=47 // pred_fallthru
          _
        // Predicated region
        $region53: #{tpu_custom_call.1} parent=47 // pred_check
          %p718 = pneg %p159
        $region54: #{tpu_custom_call.1} parent=47 // pred_check_branch
          %720 = sbr.rel (%p718) target = $region56
        $region55: #{tpu_custom_call.1} parent=47 // pred_region
          %s721 = sand.u32 %s24, 1
          %s722 = scalar_lea.sflag [#allocation5], %s721
          %s723 = sand.u32 %s144, 1
          %s724 = smul.addr %s723, 32
          %s725 = scalar_lea.vmem [#allocation4], %s724
          %726 = dma.done %s722, 512
        $region56: #{tpu_custom_call.1} parent=47 // pred_fallthru
          _
        // Predicated region
        $region57: #{tpu_custom_call.1} parent=47 // pred_check
          %p727 = pneg %p187
        $region58: #{tpu_custom_call.1} parent=47 // pred_check_branch
          %729 = sbr.rel (%p727) target = $region60
        $region59: #{tpu_custom_call.1} parent=47 // pred_region
          %s730 = sand.u32 %s24, 1
          %s731 = scalar_lea.sflag [#allocation5], %s730
          %s732 = sand.u32 %s172, 1
          %s733 = smul.addr %s732, 32
          %s734 = scalar_lea.vmem [#allocation6], %s733
          %735 = dma.done %s731, 512
        $region60: #{tpu_custom_call.1} parent=47 // pred_fallthru
          _
      $region48: #{tpu_custom_call.1} parent=5 // pred_fallthru
        _
    $region6: #{tpu_custom_call.1} parent=1 // loop_footer
      %s22 = sadd.s32 1, %s18
    $region7: #{tpu_custom_call.1} parent=1 // loop_footer_branch
      %17 = sbr.rel target = $region3
    $region8: #{tpu_custom_call.1} parent=1 // loop_exit
      _
    %736 = vsyncpa [#allocation3], 1
    %s737 = scalar_lea.sflag [#allocation3], 1
    %738 = vsyncpa %s737, 1
    %739 = vsyncpa [#allocation5], 1
    %s740 = scalar_lea.sflag [#allocation5], 1
    %741 = vsyncpa %s740, 1

</llo_original>
